<compile_context>
chip_gen: v6e
topology: v6e:2x2x1
jax: 0.10.0
libtpu: 0.0.40
codegen_flags: <defaults>
</compile_context>

<pallas_src>
from functools import partial

import numpy as np
import jax
import jax.numpy as jnp
from jax.experimental import pallas as pl
from jax.experimental.pallas import tpu as pltpu


# ----------------------------------------------------------------------------- #
# Constant (host-side) construction of the fused pool-pool-linear weight.        #
# ----------------------------------------------------------------------------- #
def avg_pool_matrix(H, W, k, s):
    """Dense (H*W, Ho*Wo) matrix M s.t. flat(avg_pool2d(x, k, s)) = flat(x) @ M."""
    Ho = (H - k) // s + 1
    Wo = (W - k) // s + 1
    M = np.zeros((H * W, Ho * Wo), dtype=np.float32)
    inv = 1.0 / (k * k)
    for i in range(Ho):
        for j in range(Wo):
            for di in range(k):
                for dj in range(k):
                    M[(i * s + di) * W + (j * s + dj), i * Wo + j] = inv
    return M


def fuse_params(W1, b1, W2, b2, H, W, pool_k=2, pool_s=2):
    """Fold AvgPool2d(2,2) o AvgPool2d(2,2) o Linear into one (H*W, hidden) weight.

    Call this ONCE per parameter set and cache the result (it is the only part
    with Python loops / host work)."""
    hidden = W1.shape[0]
    M12 = np.matmul(
        avg_pool_matrix(H, W, pool_k, pool_s),
        avg_pool_matrix(H // pool_s, W // pool_s, pool_k, pool_s),
    )  # (H*W, (H//4)*(W//4)), constant
    Wf = jnp.dot(jnp.asarray(M12), jnp.asarray(W1, jnp.float32).T)      # (H*W, hidden)
    b1r = jnp.asarray(b1, jnp.float32).reshape(1, hidden)               # (1, hidden)
    w2r = jnp.asarray(W2, jnp.float32).reshape(1, hidden)               # (1, hidden)
    b2r = jnp.asarray(b2, jnp.float32).reshape(1, 1)                    # (1, 1)
    return Wf, b1r, w2r, b2r


# ----------------------------------------------------------------------------- #
# Kernel                                                                          #
# ----------------------------------------------------------------------------- #
def _sigmoid(v):
    # Numerically stable sigmoid (no inf intermediates); tanh runs on the EUP slot.
    return 0.5 * (jnp.tanh(0.5 * v) + 1.0)


def blink_kernel(x_ref, wf_ref, b1_ref, w2_ref, b2_ref, out_ref):
    # x_ref: (tn, F) flattened (C=1) NCHW image tile (possibly a ragged last tile).
    x = x_ref[...]
    # pool -> pool -> fullyConnectedOne fused into one (F, hidden) weight.
    h = jnp.dot(x, wf_ref[...], preferred_element_type=jnp.float32) + b1_ref[...]
    h = _sigmoid(h)                                            # (tn, hidden), f32
    # outputLayer as W2 (1,hidden) contracted against h (tn,hidden) on the MXU,
    # producing a lane-dense (1, tn) row (unmasked vst writeback).
    o = jax.lax.dot_general(
        w2_ref[...], h,
        dimension_numbers=(((1,), (1,)), ((), ())),
        preferred_element_type=jnp.float32,
    ) + b2_ref[...]                                            # (1, tn)
    out_ref[...] = _sigmoid(o).reshape(out_ref.shape)          # (1, 1, tn)


# ----------------------------------------------------------------------------- #
# Wrapper                                                                         #
# ----------------------------------------------------------------------------- #
def _pick_tile(n, tile_n):
    """Batch tile: multiple of 8, capped so the grid has >=2 steps when possible
    (keeps both v7x TensorCores busy), or the whole batch when it already fits."""
    tile_n = max(8, (tile_n // 8) * 8)
    half = (((n + 1) // 2) + 7) // 8 * 8
    tn = min(tile_n, half)
    if tn >= n:
        tn = n  # single full tile, no ragged block
    return tn


@partial(jax.jit, static_argnames=("tile_n",))
def blink_forward_fused(x_nchw, Wf, b1r, w2r, b2r, *, tile_n=1024):
    """Forward pass given pre-fused parameters (from fuse_params)."""
    N = x_nchw.shape[0]
    x_flat = x_nchw.reshape(N, -1)            # torch .reshape(N, -1) order; keep dtype
    F = x_flat.shape[1]
    hidden = Wf.shape[1]
    Wf = Wf.astype(x_flat.dtype)              # stream x in its own dtype (bf16 ok)

    tn = _pick_tile(N, tile_n)
    num_tiles = -(-N // tn)                   # cdiv; last block ragged, no x padding

    out = pl.pallas_call(
        blink_kernel,
        out_shape=jax.ShapeDtypeStruct((num_tiles, 1, tn), jnp.float32),
        grid=(num_tiles,),
        in_specs=[
            pl.BlockSpec((tn, F), lambda i: (i, 0)),        # x tile (pipelined, ragged tail)
            pl.BlockSpec((F, hidden), lambda i: (0, 0)),    # fused weight, resident
            pl.BlockSpec((1, hidden), lambda i: (0, 0)),    # b1, resident
            pl.BlockSpec((1, hidden), lambda i: (0, 0)),    # W2 row, resident
            pl.BlockSpec((1, 1), lambda i: (0, 0)),         # b2, resident
        ],
        out_specs=pl.BlockSpec((1, 1, tn), lambda i: (i, 0, 0)),   # lane-dense row/tile
        compiler_params=pltpu.CompilerParams(
            dimension_semantics=("parallel",),              # tiles shard across TCs on v7x
            vmem_limit_bytes=32 * 1024 * 1024,              # v5e default (16 MiB) too small
        ),
    )(x_flat, Wf, b1r, w2r, b2r)

    # Drop garbage rows of the ragged last tile; back to (N, 1).
    return out.reshape(-1)[:N].reshape(N, 1)


def blink_forward(x_nchw, W1, b1, W2, b2, tile_n=1024):
    """Convenience one-shot wrapper. In a hot loop, call fuse_params once and
    reuse its outputs with blink_forward_fused."""
    N, C, H, W = x_nchw.shape
    assert C == 1, "module config used here has no conv layers -> single channel"
    Wf, b1r, w2r, b2r = fuse_params(W1, b1, W2, b2, H, W)
    return blink_forward_fused(x_nchw, Wf, b1r, w2r, b2r, tile_n=tile_n)


# ----------------------------------------------------------------------------- #
# Pure-JAX reference mirroring the PyTorch forward (for correctness checks).     #
# ----------------------------------------------------------------------------- #
def ref_forward(x, W1, b1, W2, b2):
    def pool(v):
        n, c, h, w = v.shape
        return v.reshape(n, c, h // 2, 2, w // 2, 2).mean(axis=(3, 5))
    o = pool(x)            # conditional self.avg_pooling
    o = pool(o)            # unconditional second self.avg_pooling in forward()
    o = o.reshape(o.shape[0], -1)
    o = 1.0 / (1.0 + jnp.exp(-(o @ W1.T + b1)))
    o = 1.0 / (1.0 + jnp.exp(-(o @ W2.T + b2)))
    return o


if __name__ == "__main__":
    H, W = 48, 48
    hidden = 20
    feat = (H // 4) * (W // 4)  # 144, matches module's full_connected_one_len = (24 // 2)**2

    key = jax.random.PRNGKey(0)
    kx1, kx2, kw1, kb1, kw2, kb2 = jax.random.split(key, 6)

    # Deterministic PyTorch-style (uniform +/- 1/sqrt(fan_in)) parameter init.
    lim1 = 1.0 / np.sqrt(feat)
    W1 = jax.random.uniform(kw1, (hidden, feat), jnp.float32, -lim1, lim1)
    b1 = jax.random.uniform(kb1, (hidden,), jnp.float32, -lim1, lim1)
    lim2 = 1.0 / np.sqrt(hidden)
    W2 = jax.random.uniform(kw2, (1, hidden), jnp.float32, -lim2, lim2)
    b2 = jax.random.uniform(kb2, (1,), jnp.float32, -lim2, lim2)

    # Constant fusion done exactly once; reused for both batches below.
    Wf, b1r, w2r, b2r = fuse_params(W1, b1, W2, b2, H, W)

    # Small batch: single full tile.
    x_small = jax.random.normal(kx1, (2, 1, H, W), dtype=jnp.float32)
    out_small = jax.block_until_ready(blink_forward_fused(x_small, Wf, b1r, w2r, b2r))
    ref_small = ref_forward(x_small, W1, b1, W2, b2)
    assert out_small.shape == (2, 1)
    assert jnp.allclose(out_small, ref_small, atol=1e-4, rtol=1e-4), (out_small, ref_small)

    # Multi-tile ragged path: N=40 with tile_n=16 -> grid of 3, last block partial
    # (validates the no-pad cdiv grid against the reference).
    x_big = jax.random.normal(kx2, (40, 1, H, W), dtype=jnp.float32)
    out_big = jax.block_until_ready(
        blink_forward_fused(x_big, Wf, b1r, w2r, b2r, tile_n=16))
    ref_big = ref_forward(x_big, W1, b1, W2, b2)
    assert out_big.shape == (40, 1)
    assert jnp.allclose(out_big, ref_big, atol=1e-4, rtol=1e-4), (out_big, ref_big)

    print("KERNEL_OK")
</pallas_src>

<mosaic_0001>
module attributes {stable_mosaic.version = 11 : i64} {
  func.func @blink_kernel(%arg0: i32, %arg1: memref<2x2304xf32, #tpu.memory_space<vmem>>, %arg2: memref<2304x20xf32, #tpu.memory_space<vmem>>, %arg3: memref<1x20xf32, #tpu.memory_space<vmem>>, %arg4: memref<1x20xf32, #tpu.memory_space<vmem>>, %arg5: memref<1x1xf32, #tpu.memory_space<vmem>>, %arg6: memref<1x1x2xf32, #tpu.memory_space<vmem>>) attributes {dimension_semantics = [#tpu.dimension_semantics<parallel>], iteration_bounds = array<i64: 1>, scalar_prefetch = 0 : i64, scratch_operands = 0 : i64, tpu.core_type = #tpu.core_type<tc>, window_params = [{transform_indices = @transform_0, window_bounds = array<i64: 2, 2304>}, {pipeline_mode = #tpu.pipeline_mode<synchronous>, transform_indices = @transform_1, window_bounds = array<i64: 2304, 20>}, {pipeline_mode = #tpu.pipeline_mode<synchronous>, transform_indices = @transform_2, window_bounds = array<i64: 1, 20>}, {pipeline_mode = #tpu.pipeline_mode<synchronous>, transform_indices = @transform_3, window_bounds = array<i64: 1, 20>}, {pipeline_mode = #tpu.pipeline_mode<synchronous>, transform_indices = @transform_4, window_bounds = array<i64: 1, 1>}, {transform_indices = @transform_5, window_bounds = array<i64: 1, 1, 2>}]} {
    %c0 = arith.constant 0 : index
    %c0_0 = arith.constant 0 : index
    %0 = vector.load %arg1[%c0, %c0_0] : memref<2x2304xf32, #tpu.memory_space<vmem>>, vector<2x2304xf32>
    %c0_1 = arith.constant 0 : index
    %c0_2 = arith.constant 0 : index
    %1 = vector.load %arg2[%c0_1, %c0_2] : memref<2304x20xf32, #tpu.memory_space<vmem>>, vector<2304x20xf32>
    %cst = arith.constant dense<0.000000e+00> : vector<2x20xf32>
    %2 = tpu.matmul %0, %1, %cst {dimension_numbers = #tpu.dot_dimension_numbers<[1], [0], [0], [1], [0, 0, 1, 1], [], []>} : vector<2x2304xf32>, vector<2304x20xf32>, vector<2x20xf32> -> vector<2x20xf32>
    %c0_3 = arith.constant 0 : index
    %c0_4 = arith.constant 0 : index
    %3 = vector.load %arg3[%c0_3, %c0_4] : memref<1x20xf32, #tpu.memory_space<vmem>>, vector<1x20xf32>
    %4 = vector.broadcast %3 : vector<1x20xf32> to vector<2x20xf32>
    %5 = arith.addf %2, %4 : vector<2x20xf32>
    %cst_5 = arith.constant 5.000000e-01 : f32
    %6 = vector.broadcast %cst_5 : f32 to vector<2x20xf32>
    %7 = arith.mulf %6, %5 : vector<2x20xf32>
    %8 = math.tanh %7 : vector<2x20xf32>
    %cst_6 = arith.constant 1.000000e+00 : f32
    %9 = vector.broadcast %cst_6 : f32 to vector<2x20xf32>
    %10 = arith.addf %8, %9 : vector<2x20xf32>
    %cst_7 = arith.constant 5.000000e-01 : f32
    %11 = vector.broadcast %cst_7 : f32 to vector<2x20xf32>
    %12 = arith.mulf %11, %10 : vector<2x20xf32>
    %c0_8 = arith.constant 0 : index
    %c0_9 = arith.constant 0 : index
    %13 = vector.load %arg4[%c0_8, %c0_9] : memref<1x20xf32, #tpu.memory_space<vmem>>, vector<1x20xf32>
    %cst_10 = arith.constant dense<0.000000e+00> : vector<1x2xf32>
    %14 = tpu.matmul %13, %12, %cst_10 {dimension_numbers = #tpu.dot_dimension_numbers<[1], [1], [0], [0], [0, 0, 1, 0], [], []>} : vector<1x20xf32>, vector<2x20xf32>, vector<1x2xf32> -> vector<1x2xf32>
    %c0_11 = arith.constant 0 : index
    %c0_12 = arith.constant 0 : index
    %15 = vector.load %arg5[%c0_11, %c0_12] : memref<1x1xf32, #tpu.memory_space<vmem>>, vector<1x1xf32>
    %16 = vector.broadcast %15 : vector<1x1xf32> to vector<1x2xf32>
    %17 = arith.addf %14, %16 : vector<1x2xf32>
    %cst_13 = arith.constant 5.000000e-01 : f32
    %18 = vector.broadcast %cst_13 : f32 to vector<1x2xf32>
    %19 = arith.mulf %18, %17 : vector<1x2xf32>
    %20 = math.tanh %19 : vector<1x2xf32>
    %cst_14 = arith.constant 1.000000e+00 : f32
    %21 = vector.broadcast %cst_14 : f32 to vector<1x2xf32>
    %22 = arith.addf %20, %21 : vector<1x2xf32>
    %cst_15 = arith.constant 5.000000e-01 : f32
    %23 = vector.broadcast %cst_15 : f32 to vector<1x2xf32>
    %24 = arith.mulf %23, %22 : vector<1x2xf32>
    %25 = vector.shape_cast %24 : vector<1x2xf32> to vector<1x1x2xf32>
    %c0_16 = arith.constant 0 : index
    %c0_17 = arith.constant 0 : index
    %c0_18 = arith.constant 0 : index
    %26 = vector.load %arg6[%c0_16, %c0_17, %c0_18] : memref<1x1x2xf32, #tpu.memory_space<vmem>>, vector<1x1x2xf32>
    tpu.vector_store %arg6[%c0_16, %c0_17, %c0_18], %25 {strides = array<i32>} : memref<1x1x2xf32, #tpu.memory_space<vmem>>, vector<1x1x2xf32>,
    return
  }
  func.func @transform_0(%arg0: i32) -> (i32, i32) {
    %c0_i32 = arith.constant 0 : i32
    %c0_i32_0 = arith.constant 0 : i32
    return %arg0, %c0_i32 : i32, i32
  }
  func.func @transform_1(%arg0: i32) -> (i32, i32) {
    %c0_i32 = arith.constant 0 : i32
    %c0_i32_0 = arith.constant 0 : i32
    %c0_i32_1 = arith.constant 0 : i32
    return %c0_i32, %c0_i32_0 : i32, i32
  }
  func.func @transform_2(%arg0: i32) -> (i32, i32) {
    %c0_i32 = arith.constant 0 : i32
    %c0_i32_0 = arith.constant 0 : i32
    %c0_i32_1 = arith.constant 0 : i32
    return %c0_i32, %c0_i32_0 : i32, i32
  }
  func.func @transform_3(%arg0: i32) -> (i32, i32) {
    %c0_i32 = arith.constant 0 : i32
    %c0_i32_0 = arith.constant 0 : i32
    %c0_i32_1 = arith.constant 0 : i32
    return %c0_i32, %c0_i32_0 : i32, i32
  }
  func.func @transform_4(%arg0: i32) -> (i32, i32) {
    %c0_i32 = arith.constant 0 : i32
    %c0_i32_0 = arith.constant 0 : i32
    %c0_i32_1 = arith.constant 0 : i32
    return %c0_i32, %c0_i32_0 : i32, i32
  }
  func.func @transform_5(%arg0: i32) -> (i32, i32, i32) {
    %c0_i32 = arith.constant 0 : i32
    %c0_i32_0 = arith.constant 0 : i32
    %c0_i32_1 = arith.constant 0 : i32
    return %arg0, %c0_i32, %c0_i32_0 : i32, i32, i32
  }
}

</mosaic_0001>

<llo_original>
// kernel: blink_forward_fused.1
$region0: #{blink_forward_fused.1}
  #allocation0 [shape = 'u32[]', space=smem, size = 0x4, offset = 0x4, fixed_abs, tag = 'smem constant byte address 0x4 - core index']
  #allocation1 [shape = 'u32[144,128]{1,0:T(1,128)}', space=vmem, size = 0x12000, scoped, tag = 'internal scratch']
  #allocation2 [shape = 'f32[1,1]{1,0:T(1,128)S(1)}', space=vmem, size = 0x200, scoped, tag = 'scoped memory for blink_forward_fused.1']
  %s0 = inlined_call_operand.vmem [shape: f32[2,2304], index: 0, kind: input, shape index: {}]
  %s1 = inlined_call_operand.vmem [shape: f32[2304,20], index: 1, kind: input, shape index: {}]
  %s2 = inlined_call_operand.vmem [shape: f32[1,20], index: 2, kind: input, shape index: {}]
  %s3 = inlined_call_operand.vmem [shape: f32[1,20], index: 3, kind: input, shape index: {}]
  %s4 = inlined_call_operand.<no memory space> [shape: f32[1,1], index: 4, kind: input, shape index: {}]
  %s5 = inlined_call_operand.hbm [shape: f32[1,1,2], index: 5, kind: output, shape index: {}]
  %s6 = sld [smem:[#allocation0]]
  $region30: #{blink_forward_fused.1} parent=0
    _
  %s8 = ssub.s32 1, %s6
  %s9 = scalar_select 0, %s8, %s6
  %v10 = vstv %s4
  %11 = vst [vmem:[#allocation2] sm:$0x1] %v10
  $region1: #{blink_forward_fused.1} parent=0
    #allocation3 [shape = 'u8[512]{0}', space=vmem, size = 0x400, scoped, tag = 'output window, operand 0, single buffered']
    #allocation4 [shape = 's32[1]{0}', space=sflag, size = 0x4, scoped, tag = 'scoped memory for blink_forward_fused.1']
    %12 = vsyncpa [#allocation4], 0
    // Predicated region
    $region2: #{blink_forward_fused.1} parent=1 // pred_check
      _
    $region3: #{blink_forward_fused.1} parent=1 // pred_check_branch
      %14 = sbr.rel (0) target = $region5
    $region4: #{blink_forward_fused.1} parent=1 // pred_region
      _
    $region5: #{blink_forward_fused.1} parent=1 // pred_fallthru
      _
    // Predicated region
    $region6: #{blink_forward_fused.1} parent=1 // pred_check
      _
    $region7: #{blink_forward_fused.1} parent=1 // pred_check_branch
      %16 = sbr.rel (0) target = $region9
    $region8: #{blink_forward_fused.1} parent=1 // pred_region
      _
    $region9: #{blink_forward_fused.1} parent=1 // pred_fallthru
      _
    // Predicated region
    $region10: #{blink_forward_fused.1} parent=1 // pred_check
      _
    $region11: #{blink_forward_fused.1} parent=1 // pred_check_branch
      %18 = sbr.rel (0) target = $region13
    $region12: #{blink_forward_fused.1} parent=1 // pred_region
      _
    $region13: #{blink_forward_fused.1} parent=1 // pred_fallthru
      _
    // Predicated region
    $region14: #{blink_forward_fused.1} parent=1 // pred_check
      _
    $region15: #{blink_forward_fused.1} parent=1 // pred_check_branch
      %20 = sbr.rel (0) target = $region17
    $region16: #{blink_forward_fused.1} parent=1 // pred_region
      _
    $region17: #{blink_forward_fused.1} parent=1 // pred_fallthru
      _
    // Predicated region
    $region18: #{blink_forward_fused.1} parent=1 // pred_check
      _
    $region19: #{blink_forward_fused.1} parent=1 // pred_check_branch
      %22 = sbr.rel (0) target = $region21
    $region20: #{blink_forward_fused.1} parent=1 // pred_region
      _
    $region21: #{blink_forward_fused.1} parent=1 // pred_fallthru
      _
    %v23 = vld [vmem:[%s0] sm:$0xff]
    %v24 = vld [vmem:[%s0 + $0x8] sm:$0xff]
    %v25 = vld [vmem:[%s0 + $0x10] sm:$0xff]
    %v26 = vld [vmem:[%s0 + $0x18] sm:$0xff]
    %v27 = vld [vmem:[%s0 + $0x20] sm:$0xf]
    %v28 = vld [vmem:[%s1] sm:$0xff]
    %v29 = vld [vmem:[%s1 + $0x8] sm:$0xff]
    %v30 = vld [vmem:[%s1 + $0x10] sm:$0xff]
    %v31 = vld [vmem:[%s1 + $0x18] sm:$0xff]
    %v32 = vld [vmem:[%s1 + $0x20] sm:$0xff]
    %v33 = vld [vmem:[%s1 + $0x28] sm:$0xff]
    %v34 = vld [vmem:[%s1 + $0x30] sm:$0xff]
    %v35 = vld [vmem:[%s1 + $0x38] sm:$0xff]
    %v36 = vld [vmem:[%s1 + $0x40] sm:$0xff]
    %v37 = vld [vmem:[%s1 + $0x48] sm:$0xff]
    %v38 = vld [vmem:[%s1 + $0x50] sm:$0xff]
    %v39 = vld [vmem:[%s1 + $0x58] sm:$0xff]
    %v40 = vld [vmem:[%s1 + $0x60] sm:$0xff]
    %v41 = vld [vmem:[%s1 + $0x68] sm:$0xff]
    %v42 = vld [vmem:[%s1 + $0x70] sm:$0xff]
    %v43 = vld [vmem:[%s1 + $0x78] sm:$0xff]
    %v44 = vld [vmem:[%s1 + $0x80] sm:$0xff]
    %v45 = vld [vmem:[%s1 + $0x88] sm:$0xff]
    %v46 = vld [vmem:[%s1 + $0x90] sm:$0xff]
    %v47 = vld [vmem:[%s1 + $0x98] sm:$0xff]
    %v48 = vld [vmem:[%s1 + $0xa0] sm:$0xff]
    %v49 = vld [vmem:[%s1 + $0xa8] sm:$0xff]
    %v50 = vld [vmem:[%s1 + $0xb0] sm:$0xff]
    %v51 = vld [vmem:[%s1 + $0xb8] sm:$0xff]
    %v52 = vld [vmem:[%s1 + $0xc0] sm:$0xff]
    %v53 = vld [vmem:[%s1 + $0xc8] sm:$0xff]
    %v54 = vld [vmem:[%s1 + $0xd0] sm:$0xff]
    %v55 = vld [vmem:[%s1 + $0xd8] sm:$0xff]
    %v56 = vld [vmem:[%s1 + $0xe0] sm:$0xff]
    %v57 = vld [vmem:[%s1 + $0xe8] sm:$0xff]
    %v58 = vld [vmem:[%s1 + $0xf0] sm:$0xff]
    %v59 = vld [vmem:[%s1 + $0xf8] sm:$0xff]
    %v60 = vld [vmem:[%s1 + $0x100] sm:$0xff]
    %v61 = vld [vmem:[%s1 + $0x108] sm:$0xff]
    %v62 = vld [vmem:[%s1 + $0x110] sm:$0xff]
    %v63 = vld [vmem:[%s1 + $0x118] sm:$0xff]
    %v64 = vld [vmem:[%s1 + $0x120] sm:$0xff]
    %v65 = vld [vmem:[%s1 + $0x128] sm:$0xff]
    %v66 = vld [vmem:[%s1 + $0x130] sm:$0xff]
    %v67 = vld [vmem:[%s1 + $0x138] sm:$0xff]
    %v68 = vld [vmem:[%s1 + $0x140] sm:$0xff]
    %v69 = vld [vmem:[%s1 + $0x148] sm:$0xff]
    %v70 = vld [vmem:[%s1 + $0x150] sm:$0xff]
    %v71 = vld [vmem:[%s1 + $0x158] sm:$0xff]
    %v72 = vld [vmem:[%s1 + $0x160] sm:$0xff]
    %v73 = vld [vmem:[%s1 + $0x168] sm:$0xff]
    %v74 = vld [vmem:[%s1 + $0x170] sm:$0xff]
    %v75 = vld [vmem:[%s1 + $0x178] sm:$0xff]
    %v76 = vld [vmem:[%s1 + $0x180] sm:$0xff]
    %v77 = vld [vmem:[%s1 + $0x188] sm:$0xff]
    %v78 = vld [vmem:[%s1 + $0x190] sm:$0xff]
    %v79 = vld [vmem:[%s1 + $0x198] sm:$0xff]
    %v80 = vld [vmem:[%s1 + $0x1a0] sm:$0xff]
    %v81 = vld [vmem:[%s1 + $0x1a8] sm:$0xff]
    %v82 = vld [vmem:[%s1 + $0x1b0] sm:$0xff]
    %v83 = vld [vmem:[%s1 + $0x1b8] sm:$0xff]
    %v84 = vld [vmem:[%s1 + $0x1c0] sm:$0xff]
    %v85 = vld [vmem:[%s1 + $0x1c8] sm:$0xff]
    %v86 = vld [vmem:[%s1 + $0x1d0] sm:$0xff]
    %v87 = vld [vmem:[%s1 + $0x1d8] sm:$0xff]
    %v88 = vld [vmem:[%s1 + $0x1e0] sm:$0xff]
    %v89 = vld [vmem:[%s1 + $0x1e8] sm:$0xff]
    %v90 = vld [vmem:[%s1 + $0x1f0] sm:$0xff]
    %v91 = vld [vmem:[%s1 + $0x1f8] sm:$0xff]
    %v92 = vld [vmem:[%s1 + $0x200] sm:$0xff]
    %v93 = vld [vmem:[%s1 + $0x208] sm:$0xff]
    %v94 = vld [vmem:[%s1 + $0x210] sm:$0xff]
    %v95 = vld [vmem:[%s1 + $0x218] sm:$0xff]
    %v96 = vld [vmem:[%s1 + $0x220] sm:$0xff]
    %v97 = vld [vmem:[%s1 + $0x228] sm:$0xff]
    %v98 = vld [vmem:[%s1 + $0x230] sm:$0xff]
    %v99 = vld [vmem:[%s1 + $0x238] sm:$0xff]
    %v100 = vld [vmem:[%s1 + $0x240] sm:$0xff]
    %v101 = vld [vmem:[%s1 + $0x248] sm:$0xff]
    %v102 = vld [vmem:[%s1 + $0x250] sm:$0xff]
    %v103 = vld [vmem:[%s1 + $0x258] sm:$0xff]
    %v104 = vld [vmem:[%s1 + $0x260] sm:$0xff]
    %v105 = vld [vmem:[%s1 + $0x268] sm:$0xff]
    %v106 = vld [vmem:[%s1 + $0x270] sm:$0xff]
    %v107 = vld [vmem:[%s1 + $0x278] sm:$0xff]
    %v108 = vld [vmem:[%s1 + $0x280] sm:$0xff]
    %v109 = vld [vmem:[%s1 + $0x288] sm:$0xff]
    %v110 = vld [vmem:[%s1 + $0x290] sm:$0xff]
    %v111 = vld [vmem:[%s1 + $0x298] sm:$0xff]
    %v112 = vld [vmem:[%s1 + $0x2a0] sm:$0xff]
    %v113 = vld [vmem:[%s1 + $0x2a8] sm:$0xff]
    %v114 = vld [vmem:[%s1 + $0x2b0] sm:$0xff]
    %v115 = vld [vmem:[%s1 + $0x2b8] sm:$0xff]
    %v116 = vld [vmem:[%s1 + $0x2c0] sm:$0xff]
    %v117 = vld [vmem:[%s1 + $0x2c8] sm:$0xff]
    %v118 = vld [vmem:[%s1 + $0x2d0] sm:$0xff]
    %v119 = vld [vmem:[%s1 + $0x2d8] sm:$0xff]
    %v120 = vld [vmem:[%s1 + $0x2e0] sm:$0xff]
    %v121 = vld [vmem:[%s1 + $0x2e8] sm:$0xff]
    %v122 = vld [vmem:[%s1 + $0x2f0] sm:$0xff]
    %v123 = vld [vmem:[%s1 + $0x2f8] sm:$0xff]
    %v124 = vld [vmem:[%s1 + $0x300] sm:$0xff]
    %v125 = vld [vmem:[%s1 + $0x308] sm:$0xff]
    %v126 = vld [vmem:[%s1 + $0x310] sm:$0xff]
    %v127 = vld [vmem:[%s1 + $0x318] sm:$0xff]
    %v128 = vld [vmem:[%s1 + $0x320] sm:$0xff]
    %v129 = vld [vmem:[%s1 + $0x328] sm:$0xff]
    %v130 = vld [vmem:[%s1 + $0x330] sm:$0xff]
    %v131 = vld [vmem:[%s1 + $0x338] sm:$0xff]
    %v132 = vld [vmem:[%s1 + $0x340] sm:$0xff]
    %v133 = vld [vmem:[%s1 + $0x348] sm:$0xff]
    %v134 = vld [vmem:[%s1 + $0x350] sm:$0xff]
    %v135 = vld [vmem:[%s1 + $0x358] sm:$0xff]
    %v136 = vld [vmem:[%s1 + $0x360] sm:$0xff]
    %v137 = vld [vmem:[%s1 + $0x368] sm:$0xff]
    %v138 = vld [vmem:[%s1 + $0x370] sm:$0xff]
    %v139 = vld [vmem:[%s1 + $0x378] sm:$0xff]
    %v140 = vld [vmem:[%s1 + $0x380] sm:$0xff]
    %v141 = vld [vmem:[%s1 + $0x388] sm:$0xff]
    %v142 = vld [vmem:[%s1 + $0x390] sm:$0xff]
    %v143 = vld [vmem:[%s1 + $0x398] sm:$0xff]
    %v144 = vld [vmem:[%s1 + $0x3a0] sm:$0xff]
    %v145 = vld [vmem:[%s1 + $0x3a8] sm:$0xff]
    %v146 = vld [vmem:[%s1 + $0x3b0] sm:$0xff]
    %v147 = vld [vmem:[%s1 + $0x3b8] sm:$0xff]
    %v148 = vld [vmem:[%s1 + $0x3c0] sm:$0xff]
    %v149 = vld [vmem:[%s1 + $0x3c8] sm:$0xff]
    %v150 = vld [vmem:[%s1 + $0x3d0] sm:$0xff]
    %v151 = vld [vmem:[%s1 + $0x3d8] sm:$0xff]
    %v152 = vld [vmem:[%s1 + $0x3e0] sm:$0xff]
    %v153 = vld [vmem:[%s1 + $0x3e8] sm:$0xff]
    %v154 = vld [vmem:[%s1 + $0x3f0] sm:$0xff]
    %v155 = vld [vmem:[%s1 + $0x3f8] sm:$0xff]
    %v156 = vld [vmem:[%s1 + $0x400] sm:$0xff]
    %v157 = vld [vmem:[%s1 + $0x408] sm:$0xff]
    %v158 = vld [vmem:[%s1 + $0x410] sm:$0xff]
    %v159 = vld [vmem:[%s1 + $0x418] sm:$0xff]
    %v160 = vld [vmem:[%s1 + $0x420] sm:$0xff]
    %v161 = vld [vmem:[%s1 + $0x428] sm:$0xff]
    %v162 = vld [vmem:[%s1 + $0x430] sm:$0xff]
    %v163 = vld [vmem:[%s1 + $0x438] sm:$0xff]
    %v164 = vld [vmem:[%s1 + $0x440] sm:$0xff]
    %v165 = vld [vmem:[%s1 + $0x448] sm:$0xff]
    %v166 = vld [vmem:[%s1 + $0x450] sm:$0xff]
    %v167 = vld [vmem:[%s1 + $0x458] sm:$0xff]
    %v168 = vld [vmem:[%s1 + $0x460] sm:$0xff]
    %v169 = vld [vmem:[%s1 + $0x468] sm:$0xff]
    %v170 = vld [vmem:[%s1 + $0x470] sm:$0xff]
    %v171 = vld [vmem:[%s1 + $0x478] sm:$0xff]
    %v172 = vld [vmem:[%s1 + $0x480] sm:$0xff]
    %v173 = vld [vmem:[%s1 + $0x488] sm:$0xff]
    %v174 = vld [vmem:[%s1 + $0x490] sm:$0xff]
    %v175 = vld [vmem:[%s1 + $0x498] sm:$0xff]
    %v176 = vld [vmem:[%s1 + $0x4a0] sm:$0xff]
    %v177 = vld [vmem:[%s1 + $0x4a8] sm:$0xff]
    %v178 = vld [vmem:[%s1 + $0x4b0] sm:$0xff]
    %v179 = vld [vmem:[%s1 + $0x4b8] sm:$0xff]
    %v180 = vld [vmem:[%s1 + $0x4c0] sm:$0xff]
    %v181 = vld [vmem:[%s1 + $0x4c8] sm:$0xff]
    %v182 = vld [vmem:[%s1 + $0x4d0] sm:$0xff]
    %v183 = vld [vmem:[%s1 + $0x4d8] sm:$0xff]
    %v184 = vld [vmem:[%s1 + $0x4e0] sm:$0xff]
    %v185 = vld [vmem:[%s1 + $0x4e8] sm:$0xff]
    %v186 = vld [vmem:[%s1 + $0x4f0] sm:$0xff]
    %v187 = vld [vmem:[%s1 + $0x4f8] sm:$0xff]
    %v188 = vld [vmem:[%s1 + $0x500] sm:$0xff]
    %v189 = vld [vmem:[%s1 + $0x508] sm:$0xff]
    %v190 = vld [vmem:[%s1 + $0x510] sm:$0xff]
    %v191 = vld [vmem:[%s1 + $0x518] sm:$0xff]
    %v192 = vld [vmem:[%s1 + $0x520] sm:$0xff]
    %v193 = vld [vmem:[%s1 + $0x528] sm:$0xff]
    %v194 = vld [vmem:[%s1 + $0x530] sm:$0xff]
    %v195 = vld [vmem:[%s1 + $0x538] sm:$0xff]
    %v196 = vld [vmem:[%s1 + $0x540] sm:$0xff]
    %v197 = vld [vmem:[%s1 + $0x548] sm:$0xff]
    %v198 = vld [vmem:[%s1 + $0x550] sm:$0xff]
    %v199 = vld [vmem:[%s1 + $0x558] sm:$0xff]
    %v200 = vld [vmem:[%s1 + $0x560] sm:$0xff]
    %v201 = vld [vmem:[%s1 + $0x568] sm:$0xff]
    %v202 = vld [vmem:[%s1 + $0x570] sm:$0xff]
    %v203 = vld [vmem:[%s1 + $0x578] sm:$0xff]
    %v204 = vld [vmem:[%s1 + $0x580] sm:$0xff]
    %v205 = vld [vmem:[%s1 + $0x588] sm:$0xff]
    %v206 = vld [vmem:[%s1 + $0x590] sm:$0xff]
    %v207 = vld [vmem:[%s1 + $0x598] sm:$0xff]
    %v208 = vld [vmem:[%s1 + $0x5a0] sm:$0xff]
    %v209 = vld [vmem:[%s1 + $0x5a8] sm:$0xff]
    %v210 = vld [vmem:[%s1 + $0x5b0] sm:$0xff]
    %v211 = vld [vmem:[%s1 + $0x5b8] sm:$0xff]
    %v212 = vld [vmem:[%s1 + $0x5c0] sm:$0xff]
    %v213 = vld [vmem:[%s1 + $0x5c8] sm:$0xff]
    %v214 = vld [vmem:[%s1 + $0x5d0] sm:$0xff]
    %v215 = vld [vmem:[%s1 + $0x5d8] sm:$0xff]
    %v216 = vld [vmem:[%s1 + $0x5e0] sm:$0xff]
    %v217 = vld [vmem:[%s1 + $0x5e8] sm:$0xff]
    %v218 = vld [vmem:[%s1 + $0x5f0] sm:$0xff]
    %v219 = vld [vmem:[%s1 + $0x5f8] sm:$0xff]
    %v220 = vld [vmem:[%s1 + $0x600] sm:$0xff]
    %v221 = vld [vmem:[%s1 + $0x608] sm:$0xff]
    %v222 = vld [vmem:[%s1 + $0x610] sm:$0xff]
    %v223 = vld [vmem:[%s1 + $0x618] sm:$0xff]
    %v224 = vld [vmem:[%s1 + $0x620] sm:$0xff]
    %v225 = vld [vmem:[%s1 + $0x628] sm:$0xff]
    %v226 = vld [vmem:[%s1 + $0x630] sm:$0xff]
    %v227 = vld [vmem:[%s1 + $0x638] sm:$0xff]
    %v228 = vld [vmem:[%s1 + $0x640] sm:$0xff]
    %v229 = vld [vmem:[%s1 + $0x648] sm:$0xff]
    %v230 = vld [vmem:[%s1 + $0x650] sm:$0xff]
    %v231 = vld [vmem:[%s1 + $0x658] sm:$0xff]
    %v232 = vld [vmem:[%s1 + $0x660] sm:$0xff]
    %v233 = vld [vmem:[%s1 + $0x668] sm:$0xff]
    %v234 = vld [vmem:[%s1 + $0x670] sm:$0xff]
    %v235 = vld [vmem:[%s1 + $0x678] sm:$0xff]
    %v236 = vld [vmem:[%s1 + $0x680] sm:$0xff]
    %v237 = vld [vmem:[%s1 + $0x688] sm:$0xff]
    %v238 = vld [vmem:[%s1 + $0x690] sm:$0xff]
    %v239 = vld [vmem:[%s1 + $0x698] sm:$0xff]
    %v240 = vld [vmem:[%s1 + $0x6a0] sm:$0xff]
    %v241 = vld [vmem:[%s1 + $0x6a8] sm:$0xff]
    %v242 = vld [vmem:[%s1 + $0x6b0] sm:$0xff]
    %v243 = vld [vmem:[%s1 + $0x6b8] sm:$0xff]
    %v244 = vld [vmem:[%s1 + $0x6c0] sm:$0xff]
    %v245 = vld [vmem:[%s1 + $0x6c8] sm:$0xff]
    %v246 = vld [vmem:[%s1 + $0x6d0] sm:$0xff]
    %v247 = vld [vmem:[%s1 + $0x6d8] sm:$0xff]
    %v248 = vld [vmem:[%s1 + $0x6e0] sm:$0xff]
    %v249 = vld [vmem:[%s1 + $0x6e8] sm:$0xff]
    %v250 = vld [vmem:[%s1 + $0x6f0] sm:$0xff]
    %v251 = vld [vmem:[%s1 + $0x6f8] sm:$0xff]
    %v252 = vld [vmem:[%s1 + $0x700] sm:$0xff]
    %v253 = vld [vmem:[%s1 + $0x708] sm:$0xff]
    %v254 = vld [vmem:[%s1 + $0x710] sm:$0xff]
    %v255 = vld [vmem:[%s1 + $0x718] sm:$0xff]
    %v256 = vld [vmem:[%s1 + $0x720] sm:$0xff]
    %v257 = vld [vmem:[%s1 + $0x728] sm:$0xff]
    %v258 = vld [vmem:[%s1 + $0x730] sm:$0xff]
    %v259 = vld [vmem:[%s1 + $0x738] sm:$0xff]
    %v260 = vld [vmem:[%s1 + $0x740] sm:$0xff]
    %v261 = vld [vmem:[%s1 + $0x748] sm:$0xff]
    %v262 = vld [vmem:[%s1 + $0x750] sm:$0xff]
    %v263 = vld [vmem:[%s1 + $0x758] sm:$0xff]
    %v264 = vld [vmem:[%s1 + $0x760] sm:$0xff]
    %v265 = vld [vmem:[%s1 + $0x768] sm:$0xff]
    %v266 = vld [vmem:[%s1 + $0x770] sm:$0xff]
    %v267 = vld [vmem:[%s1 + $0x778] sm:$0xff]
    %v268 = vld [vmem:[%s1 + $0x780] sm:$0xff]
    %v269 = vld [vmem:[%s1 + $0x788] sm:$0xff]
    %v270 = vld [vmem:[%s1 + $0x790] sm:$0xff]
    %v271 = vld [vmem:[%s1 + $0x798] sm:$0xff]
    %v272 = vld [vmem:[%s1 + $0x7a0] sm:$0xff]
    %v273 = vld [vmem:[%s1 + $0x7a8] sm:$0xff]
    %v274 = vld [vmem:[%s1 + $0x7b0] sm:$0xff]
    %v275 = vld [vmem:[%s1 + $0x7b8] sm:$0xff]
    %v276 = vld [vmem:[%s1 + $0x7c0] sm:$0xff]
    %v277 = vld [vmem:[%s1 + $0x7c8] sm:$0xff]
    %v278 = vld [vmem:[%s1 + $0x7d0] sm:$0xff]
    %v279 = vld [vmem:[%s1 + $0x7d8] sm:$0xff]
    %v280 = vld [vmem:[%s1 + $0x7e0] sm:$0xff]
    %v281 = vld [vmem:[%s1 + $0x7e8] sm:$0xff]
    %v282 = vld [vmem:[%s1 + $0x7f0] sm:$0xff]
    %v283 = vld [vmem:[%s1 + $0x7f8] sm:$0xff]
    %v284 = vld [vmem:[%s1 + $0x800] sm:$0xff]
    %v285 = vld [vmem:[%s1 + $0x808] sm:$0xff]
    %v286 = vld [vmem:[%s1 + $0x810] sm:$0xff]
    %v287 = vld [vmem:[%s1 + $0x818] sm:$0xff]
    %v288 = vld [vmem:[%s1 + $0x820] sm:$0xff]
    %v289 = vld [vmem:[%s1 + $0x828] sm:$0xff]
    %v290 = vld [vmem:[%s1 + $0x830] sm:$0xff]
    %v291 = vld [vmem:[%s1 + $0x838] sm:$0xff]
    %v292 = vld [vmem:[%s1 + $0x840] sm:$0xff]
    %v293 = vld [vmem:[%s1 + $0x848] sm:$0xff]
    %v294 = vld [vmem:[%s1 + $0x850] sm:$0xff]
    %v295 = vld [vmem:[%s1 + $0x858] sm:$0xff]
    %v296 = vld [vmem:[%s1 + $0x860] sm:$0xff]
    %v297 = vld [vmem:[%s1 + $0x868] sm:$0xff]
    %v298 = vld [vmem:[%s1 + $0x870] sm:$0xff]
    %v299 = vld [vmem:[%s1 + $0x878] sm:$0xff]
    %v300 = vld [vmem:[%s1 + $0x880] sm:$0xff]
    %v301 = vld [vmem:[%s1 + $0x888] sm:$0xff]
    %v302 = vld [vmem:[%s1 + $0x890] sm:$0xff]
    %v303 = vld [vmem:[%s1 + $0x898] sm:$0xff]
    %v304 = vld [vmem:[%s1 + $0x8a0] sm:$0xff]
    %v305 = vld [vmem:[%s1 + $0x8a8] sm:$0xff]
    %v306 = vld [vmem:[%s1 + $0x8b0] sm:$0xff]
    %v307 = vld [vmem:[%s1 + $0x8b8] sm:$0xff]
    %v308 = vld [vmem:[%s1 + $0x8c0] sm:$0xff]
    %v309 = vld [vmem:[%s1 + $0x8c8] sm:$0xff]
    %v310 = vld [vmem:[%s1 + $0x8d0] sm:$0xff]
    %v311 = vld [vmem:[%s1 + $0x8d8] sm:$0xff]
    %v312 = vld [vmem:[%s1 + $0x8e0] sm:$0xff]
    %v313 = vld [vmem:[%s1 + $0x8e8] sm:$0xff]
    %v314 = vld [vmem:[%s1 + $0x8f0] sm:$0xff]
    %v315 = vld [vmem:[%s1 + $0x8f8] sm:$0xff]
    %v316 = vld [vmem:[%s2] sm:$0x1]
    %v318 = vlaneseq
    %v319 = vshrl.u32 %v318, 7
    %v320 = vsub.s32 0, %v319
    %v321 = vrot.slane %v316, %v320
    %v328 = vcombine.high %v23, %v23
    %v330 = vunpack.c.l.s4 1983009808
    %v331 = vunpack.c.0.s8 %v330
    %v332 = vlaneseq
    %v333 = vshrl.u32 %v332, 7
    %v334 = vsub.s32 %v331, %v333
    %v335 = vrot.slane %v23, %v334
    %v337 = vunpack.c.l.s4 1983009808
    %v338 = vunpack.c.0.s8 %v337
    %v339 = vlaneseq
    %v340 = vshrl.u32 %v339, 7
    %v341 = vsub.s32 %v338, %v340
    %v342 = vrot.slane %v328, %v341
    %v343 = vcombine.high %v335, %v335
    %v344 = vcombine.high %v342, %v342
    %v345 = vcombine.high %v24, %v24
    %v347 = vunpack.c.l.s4 1983009808
    %v348 = vunpack.c.0.s8 %v347
    %v349 = vlaneseq
    %v350 = vshrl.u32 %v349, 7
    %v351 = vsub.s32 %v348, %v350
    %v352 = vrot.slane %v24, %v351
    %v354 = vunpack.c.l.s4 1983009808
    %v355 = vunpack.c.0.s8 %v354
    %v356 = vlaneseq
    %v357 = vshrl.u32 %v356, 7
    %v358 = vsub.s32 %v355, %v357
    %v359 = vrot.slane %v345, %v358
    %v360 = vcombine.high %v352, %v352
    %v361 = vcombine.high %v359, %v359
    %v362 = vcombine.high %v25, %v25
    %v364 = vunpack.c.l.s4 1983009808
    %v365 = vunpack.c.0.s8 %v364
    %v366 = vlaneseq
    %v367 = vshrl.u32 %v366, 7
    %v368 = vsub.s32 %v365, %v367
    %v369 = vrot.slane %v25, %v368
    %v371 = vunpack.c.l.s4 1983009808
    %v372 = vunpack.c.0.s8 %v371
    %v373 = vlaneseq
    %v374 = vshrl.u32 %v373, 7
    %v375 = vsub.s32 %v372, %v374
    %v376 = vrot.slane %v362, %v375
    %v377 = vcombine.high %v369, %v369
    %v378 = vcombine.high %v376, %v376
    %v379 = vcombine.high %v26, %v26
    %v381 = vunpack.c.l.s4 1983009808
    %v382 = vunpack.c.0.s8 %v381
    %v383 = vlaneseq
    %v384 = vshrl.u32 %v383, 7
    %v385 = vsub.s32 %v382, %v384
    %v386 = vrot.slane %v26, %v385
    %v388 = vunpack.c.l.s4 1983009808
    %v389 = vunpack.c.0.s8 %v388
    %v390 = vlaneseq
    %v391 = vshrl.u32 %v390, 7
    %v392 = vsub.s32 %v389, %v391
    %v393 = vrot.slane %v379, %v392
    %v394 = vcombine.high %v386, %v386
    %v395 = vcombine.high %v393, %v393
    %v397 = vunpack.c.l.s4 1983009808
    %v398 = vunpack.c.0.s8 %v397
    %v399 = vlaneseq
    %v400 = vshrl.u32 %v399, 7
    %v401 = vsub.s32 %v398, %v400
    %v402 = vrot.slane %v27, %v401
    %v403 = vcombine.high %v402, %v402
    %422 = vmatprep.subr.mxu0 0.0
    %423 = vmatpush1.msra.mxu0 %v43
    %424 = vmatprep.subr.mxu0 0.0
    %425 = vmatpush1.msra.mxu0 %v42
    %426 = vmatprep.subr.mxu0 0.0
    %427 = vmatpush1.msra.mxu0 %v41
    %428 = vmatprep.subr.mxu0 0.0
    %429 = vmatpush1.msra.mxu0 %v40
    %430 = vmatprep.subr.mxu0 0.0
    %431 = vmatpush1.msra.mxu0 %v39
    %432 = vmatprep.subr.mxu0 0.0
    %433 = vmatpush1.msra.mxu0 %v38
    %434 = vmatprep.subr.mxu0 0.0
    %435 = vmatpush1.msra.mxu0 %v37
    %436 = vmatprep.subr.mxu0 0.0
    %437 = vmatpush1.msra.mxu0 %v36
    %438 = vmatprep.subr.mxu0 0.0
    %439 = vmatpush1.msra.mxu0 %v35
    %440 = vmatprep.subr.mxu0 0.0
    %441 = vmatpush1.msra.mxu0 %v34
    %442 = vmatprep.subr.mxu0 0.0
    %443 = vmatpush1.msra.mxu0 %v33
    %444 = vmatprep.subr.mxu0 0.0
    %445 = vmatpush1.msra.mxu0 %v32
    %446 = vmatprep.subr.mxu0 0.0
    %447 = vmatpush1.msra.mxu0 %v31
    %448 = vmatprep.subr.mxu0 0.0
    %449 = vmatpush1.msra.mxu0 %v30
    %450 = vmatprep.subr.mxu0 0.0
    %451 = vmatpush1.msra.mxu0 %v29
    %452 = vmatprep.subr.mxu0 0.0
    %453 = vmatpush1.msra.mxu0 %v28
    %454 = vmatprep.subr.mxu0 0.0
    %455 = vmatpush2.msra.mxu0 %v59
    %456 = vmatprep.subr.mxu0 0.0
    %457 = vmatpush2.msra.mxu0 %v58
    %458 = vmatprep.subr.mxu0 0.0
    %459 = vmatpush2.msra.mxu0 %v57
    %460 = vmatprep.subr.mxu0 0.0
    %461 = vmatpush2.msra.mxu0 %v56
    %462 = vmatprep.subr.mxu0 0.0
    %463 = vmatpush2.msra.mxu0 %v55
    %464 = vmatprep.subr.mxu0 0.0
    %465 = vmatpush2.msra.mxu0 %v54
    %466 = vmatprep.subr.mxu0 0.0
    %467 = vmatpush2.msra.mxu0 %v53
    %468 = vmatprep.subr.mxu0 0.0
    %469 = vmatpush2.msra.mxu0 %v52
    %470 = vmatprep.subr.mxu0 0.0
    %471 = vmatpush2.msra.mxu0 %v51
    %472 = vmatprep.subr.mxu0 0.0
    %473 = vmatpush2.msra.mxu0 %v50
    %474 = vmatprep.subr.mxu0 0.0
    %475 = vmatpush2.msra.mxu0 %v49
    %476 = vmatprep.subr.mxu0 0.0
    %477 = vmatpush2.msra.mxu0 %v48
    %478 = vmatprep.subr.mxu0 0.0
    %479 = vmatpush2.msra.mxu0 %v47
    %480 = vmatprep.subr.mxu0 0.0
    %481 = vmatpush2.msra.mxu0 %v46
    %482 = vmatprep.subr.mxu0 0.0
    %483 = vmatpush2.msra.mxu0 %v45
    %484 = vmatprep.subr.mxu0 0.0
    %485 = vmatpush2.msra.mxu0 %v44
    %486 = vmatprep.mubr.f32.mxu0 %v343
    %487 = vmatmul.mubr.f32.gmra.mxu0 %v335
    %v488 = vpop.f32.mrf.mxu0
    %v489 = vadd.f32 %v321, %v488
    %v490 = vpop.f32.mrf.mxu0
    %491 = vdwg.mxu0
    %492 = vmatprep.subr.mxu0 0.0
    %493 = vmatpush1.msra.mxu0 %v75
    %494 = vmatprep.subr.mxu0 0.0
    %495 = vmatpush1.msra.mxu0 %v74
    %496 = vmatprep.subr.mxu0 0.0
    %497 = vmatpush1.msra.mxu0 %v73
    %498 = vmatprep.subr.mxu0 0.0
    %499 = vmatpush1.msra.mxu0 %v72
    %500 = vmatprep.subr.mxu0 0.0
    %501 = vmatpush1.msra.mxu0 %v71
    %502 = vmatprep.subr.mxu0 0.0
    %503 = vmatpush1.msra.mxu0 %v70
    %504 = vmatprep.subr.mxu0 0.0
    %505 = vmatpush1.msra.mxu0 %v69
    %506 = vmatprep.subr.mxu0 0.0
    %507 = vmatpush1.msra.mxu0 %v68
    %508 = vmatprep.subr.mxu0 0.0
    %509 = vmatpush1.msra.mxu0 %v67
    %510 = vmatprep.subr.mxu0 0.0
    %511 = vmatpush1.msra.mxu0 %v66
    %512 = vmatprep.subr.mxu0 0.0
    %513 = vmatpush1.msra.mxu0 %v65
    %514 = vmatprep.subr.mxu0 0.0
    %515 = vmatpush1.msra.mxu0 %v64
    %516 = vmatprep.subr.mxu0 0.0
    %517 = vmatpush1.msra.mxu0 %v63
    %518 = vmatprep.subr.mxu0 0.0
    %519 = vmatpush1.msra.mxu0 %v62
    %520 = vmatprep.subr.mxu0 0.0
    %521 = vmatpush1.msra.mxu0 %v61
    %522 = vmatprep.subr.mxu0 0.0
    %523 = vmatpush1.msra.mxu0 %v60
    %524 = vmatprep.subr.mxu0 0.0
    %525 = vmatpush2.msra.mxu0 %v91
    %526 = vmatprep.subr.mxu0 0.0
    %527 = vmatpush2.msra.mxu0 %v90
    %528 = vmatprep.subr.mxu0 0.0
    %529 = vmatpush2.msra.mxu0 %v89
    %530 = vmatprep.subr.mxu0 0.0
    %531 = vmatpush2.msra.mxu0 %v88
    %532 = vmatprep.subr.mxu0 0.0
    %533 = vmatpush2.msra.mxu0 %v87
    %534 = vmatprep.subr.mxu0 0.0
    %535 = vmatpush2.msra.mxu0 %v86
    %536 = vmatprep.subr.mxu0 0.0
    %537 = vmatpush2.msra.mxu0 %v85
    %538 = vmatprep.subr.mxu0 0.0
    %539 = vmatpush2.msra.mxu0 %v84
    %540 = vmatprep.subr.mxu0 0.0
    %541 = vmatpush2.msra.mxu0 %v83
    %542 = vmatprep.subr.mxu0 0.0
    %543 = vmatpush2.msra.mxu0 %v82
    %544 = vmatprep.subr.mxu0 0.0
    %545 = vmatpush2.msra.mxu0 %v81
    %546 = vmatprep.subr.mxu0 0.0
    %547 = vmatpush2.msra.mxu0 %v80
    %548 = vmatprep.subr.mxu0 0.0
    %549 = vmatpush2.msra.mxu0 %v79
    %550 = vmatprep.subr.mxu0 0.0
    %551 = vmatpush2.msra.mxu0 %v78
    %552 = vmatprep.subr.mxu0 0.0
    %553 = vmatpush2.msra.mxu0 %v77
    %554 = vmatprep.subr.mxu0 0.0
    %555 = vmatpush2.msra.mxu0 %v76
    %556 = vmatprep.mubr.f32.mxu0 %v344
    %557 = vmatmul.mubr.f32.gmra.mxu0 %v342
    %v558 = vpop.f32.mrf.mxu0
    %v559 = vadd.f32 %v489, %v558
    %v560 = vpop.f32.mrf.mxu0
    %561 = vdwg.mxu0
    %562 = vmatprep.subr.mxu0 0.0
    %563 = vmatpush1.msra.mxu0 %v107
    %564 = vmatprep.subr.mxu0 0.0
    %565 = vmatpush1.msra.mxu0 %v106
    %566 = vmatprep.subr.mxu0 0.0
    %567 = vmatpush1.msra.mxu0 %v105
    %568 = vmatprep.subr.mxu0 0.0
    %569 = vmatpush1.msra.mxu0 %v104
    %570 = vmatprep.subr.mxu0 0.0
    %571 = vmatpush1.msra.mxu0 %v103
    %572 = vmatprep.subr.mxu0 0.0
    %573 = vmatpush1.msra.mxu0 %v102
    %574 = vmatprep.subr.mxu0 0.0
    %575 = vmatpush1.msra.mxu0 %v101
    %576 = vmatprep.subr.mxu0 0.0
    %577 = vmatpush1.msra.mxu0 %v100
    %578 = vmatprep.subr.mxu0 0.0
    %579 = vmatpush1.msra.mxu0 %v99
    %580 = vmatprep.subr.mxu0 0.0
    %581 = vmatpush1.msra.mxu0 %v98
    %582 = vmatprep.subr.mxu0 0.0
    %583 = vmatpush1.msra.mxu0 %v97
    %584 = vmatprep.subr.mxu0 0.0
    %585 = vmatpush1.msra.mxu0 %v96
    %586 = vmatprep.subr.mxu0 0.0
    %587 = vmatpush1.msra.mxu0 %v95
    %588 = vmatprep.subr.mxu0 0.0
    %589 = vmatpush1.msra.mxu0 %v94
    %590 = vmatprep.subr.mxu0 0.0
    %591 = vmatpush1.msra.mxu0 %v93
    %592 = vmatprep.subr.mxu0 0.0
    %593 = vmatpush1.msra.mxu0 %v92
    %594 = vmatprep.subr.mxu0 0.0
    %595 = vmatpush2.msra.mxu0 %v123
    %596 = vmatprep.subr.mxu0 0.0
    %597 = vmatpush2.msra.mxu0 %v122
    %598 = vmatprep.subr.mxu0 0.0
    %599 = vmatpush2.msra.mxu0 %v121
    %600 = vmatprep.subr.mxu0 0.0
    %601 = vmatpush2.msra.mxu0 %v120
    %602 = vmatprep.subr.mxu0 0.0
    %603 = vmatpush2.msra.mxu0 %v119
    %604 = vmatprep.subr.mxu0 0.0
    %605 = vmatpush2.msra.mxu0 %v118
    %606 = vmatprep.subr.mxu0 0.0
    %607 = vmatpush2.msra.mxu0 %v117
    %608 = vmatprep.subr.mxu0 0.0
    %609 = vmatpush2.msra.mxu0 %v116
    %610 = vmatprep.subr.mxu0 0.0
    %611 = vmatpush2.msra.mxu0 %v115
    %612 = vmatprep.subr.mxu0 0.0
    %613 = vmatpush2.msra.mxu0 %v114
    %614 = vmatprep.subr.mxu0 0.0
    %615 = vmatpush2.msra.mxu0 %v113
    %616 = vmatprep.subr.mxu0 0.0
    %617 = vmatpush2.msra.mxu0 %v112
    %618 = vmatprep.subr.mxu0 0.0
    %619 = vmatpush2.msra.mxu0 %v111
    %620 = vmatprep.subr.mxu0 0.0
    %621 = vmatpush2.msra.mxu0 %v110
    %622 = vmatprep.subr.mxu0 0.0
    %623 = vmatpush2.msra.mxu0 %v109
    %624 = vmatprep.subr.mxu0 0.0
    %625 = vmatpush2.msra.mxu0 %v108
    %626 = vmatprep.mubr.f32.mxu0 %v360
    %627 = vmatmul.mubr.f32.gmra.mxu0 %v352
    %v628 = vpop.f32.mrf.mxu0
    %v629 = vadd.f32 %v559, %v628
    %v630 = vpop.f32.mrf.mxu0
    %631 = vdwg.mxu0
    %632 = vmatprep.subr.mxu0 0.0
    %633 = vmatpush1.msra.mxu0 %v139
    %634 = vmatprep.subr.mxu0 0.0
    %635 = vmatpush1.msra.mxu0 %v138
    %636 = vmatprep.subr.mxu0 0.0
    %637 = vmatpush1.msra.mxu0 %v137
    %638 = vmatprep.subr.mxu0 0.0
    %639 = vmatpush1.msra.mxu0 %v136
    %640 = vmatprep.subr.mxu0 0.0
    %641 = vmatpush1.msra.mxu0 %v135
    %642 = vmatprep.subr.mxu0 0.0
    %643 = vmatpush1.msra.mxu0 %v134
    %644 = vmatprep.subr.mxu0 0.0
    %645 = vmatpush1.msra.mxu0 %v133
    %646 = vmatprep.subr.mxu0 0.0
    %647 = vmatpush1.msra.mxu0 %v132
    %648 = vmatprep.subr.mxu0 0.0
    %649 = vmatpush1.msra.mxu0 %v131
    %650 = vmatprep.subr.mxu0 0.0
    %651 = vmatpush1.msra.mxu0 %v130
    %652 = vmatprep.subr.mxu0 0.0
    %653 = vmatpush1.msra.mxu0 %v129
    %654 = vmatprep.subr.mxu0 0.0
    %655 = vmatpush1.msra.mxu0 %v128
    %656 = vmatprep.subr.mxu0 0.0
    %657 = vmatpush1.msra.mxu0 %v127
    %658 = vmatprep.subr.mxu0 0.0
    %659 = vmatpush1.msra.mxu0 %v126
    %660 = vmatprep.subr.mxu0 0.0
    %661 = vmatpush1.msra.mxu0 %v125
    %662 = vmatprep.subr.mxu0 0.0
    %663 = vmatpush1.msra.mxu0 %v124
    %664 = vmatprep.subr.mxu0 0.0
    %665 = vmatpush2.msra.mxu0 %v155
    %666 = vmatprep.subr.mxu0 0.0
    %667 = vmatpush2.msra.mxu0 %v154
    %668 = vmatprep.subr.mxu0 0.0
    %669 = vmatpush2.msra.mxu0 %v153
    %670 = vmatprep.subr.mxu0 0.0
    %671 = vmatpush2.msra.mxu0 %v152
    %672 = vmatprep.subr.mxu0 0.0
    %673 = vmatpush2.msra.mxu0 %v151
    %674 = vmatprep.subr.mxu0 0.0
    %675 = vmatpush2.msra.mxu0 %v150
    %676 = vmatprep.subr.mxu0 0.0
    %677 = vmatpush2.msra.mxu0 %v149
    %678 = vmatprep.subr.mxu0 0.0
    %679 = vmatpush2.msra.mxu0 %v148
    %680 = vmatprep.subr.mxu0 0.0
    %681 = vmatpush2.msra.mxu0 %v147
    %682 = vmatprep.subr.mxu0 0.0
    %683 = vmatpush2.msra.mxu0 %v146
    %684 = vmatprep.subr.mxu0 0.0
    %685 = vmatpush2.msra.mxu0 %v145
    %686 = vmatprep.subr.mxu0 0.0
    %687 = vmatpush2.msra.mxu0 %v144
    %688 = vmatprep.subr.mxu0 0.0
    %689 = vmatpush2.msra.mxu0 %v143
    %690 = vmatprep.subr.mxu0 0.0
    %691 = vmatpush2.msra.mxu0 %v142
    %692 = vmatprep.subr.mxu0 0.0
    %693 = vmatpush2.msra.mxu0 %v141
    %694 = vmatprep.subr.mxu0 0.0
    %695 = vmatpush2.msra.mxu0 %v140
    %696 = vmatprep.mubr.f32.mxu0 %v361
    %697 = vmatmul.mubr.f32.gmra.mxu0 %v359
    %v698 = vpop.f32.mrf.mxu0
    %v699 = vadd.f32 %v629, %v698
    %v700 = vpop.f32.mrf.mxu0
    %701 = vdwg.mxu0
    %702 = vmatprep.subr.mxu0 0.0
    %703 = vmatpush1.msra.mxu0 %v171
    %704 = vmatprep.subr.mxu0 0.0
    %705 = vmatpush1.msra.mxu0 %v170
    %706 = vmatprep.subr.mxu0 0.0
    %707 = vmatpush1.msra.mxu0 %v169
    %708 = vmatprep.subr.mxu0 0.0
    %709 = vmatpush1.msra.mxu0 %v168
    %710 = vmatprep.subr.mxu0 0.0
    %711 = vmatpush1.msra.mxu0 %v167
    %712 = vmatprep.subr.mxu0 0.0
    %713 = vmatpush1.msra.mxu0 %v166
    %714 = vmatprep.subr.mxu0 0.0
    %715 = vmatpush1.msra.mxu0 %v165
    %716 = vmatprep.subr.mxu0 0.0
    %717 = vmatpush1.msra.mxu0 %v164
    %718 = vmatprep.subr.mxu0 0.0
    %719 = vmatpush1.msra.mxu0 %v163
    %720 = vmatprep.subr.mxu0 0.0
    %721 = vmatpush1.msra.mxu0 %v162
    %722 = vmatprep.subr.mxu0 0.0
    %723 = vmatpush1.msra.mxu0 %v161
    %724 = vmatprep.subr.mxu0 0.0
    %725 = vmatpush1.msra.mxu0 %v160
    %726 = vmatprep.subr.mxu0 0.0
    %727 = vmatpush1.msra.mxu0 %v159
    %728 = vmatprep.subr.mxu0 0.0
    %729 = vmatpush1.msra.mxu0 %v158
    %730 = vmatprep.subr.mxu0 0.0
    %731 = vmatpush1.msra.mxu0 %v157
    %732 = vmatprep.subr.mxu0 0.0
    %733 = vmatpush1.msra.mxu0 %v156
    %734 = vmatprep.subr.mxu0 0.0
    %735 = vmatpush2.msra.mxu0 %v187
    %736 = vmatprep.subr.mxu0 0.0
    %737 = vmatpush2.msra.mxu0 %v186
    %738 = vmatprep.subr.mxu0 0.0
    %739 = vmatpush2.msra.mxu0 %v185
    %740 = vmatprep.subr.mxu0 0.0
    %741 = vmatpush2.msra.mxu0 %v184
    %742 = vmatprep.subr.mxu0 0.0
    %743 = vmatpush2.msra.mxu0 %v183
    %744 = vmatprep.subr.mxu0 0.0
    %745 = vmatpush2.msra.mxu0 %v182
    %746 = vmatprep.subr.mxu0 0.0
    %747 = vmatpush2.msra.mxu0 %v181
    %748 = vmatprep.subr.mxu0 0.0
    %749 = vmatpush2.msra.mxu0 %v180
    %750 = vmatprep.subr.mxu0 0.0
    %751 = vmatpush2.msra.mxu0 %v179
    %752 = vmatprep.subr.mxu0 0.0
    %753 = vmatpush2.msra.mxu0 %v178
    %754 = vmatprep.subr.mxu0 0.0
    %755 = vmatpush2.msra.mxu0 %v177
    %756 = vmatprep.subr.mxu0 0.0
    %757 = vmatpush2.msra.mxu0 %v176
    %758 = vmatprep.subr.mxu0 0.0
    %759 = vmatpush2.msra.mxu0 %v175
    %760 = vmatprep.subr.mxu0 0.0
    %761 = vmatpush2.msra.mxu0 %v174
    %762 = vmatprep.subr.mxu0 0.0
    %763 = vmatpush2.msra.mxu0 %v173
    %764 = vmatprep.subr.mxu0 0.0
    %765 = vmatpush2.msra.mxu0 %v172
    %766 = vmatprep.mubr.f32.mxu0 %v377
    %767 = vmatmul.mubr.f32.gmra.mxu0 %v369
    %v768 = vpop.f32.mrf.mxu0
    %v769 = vadd.f32 %v699, %v768
    %v770 = vpop.f32.mrf.mxu0
    %771 = vdwg.mxu0
    %772 = vmatprep.subr.mxu0 0.0
    %773 = vmatpush1.msra.mxu0 %v203
    %774 = vmatprep.subr.mxu0 0.0
    %775 = vmatpush1.msra.mxu0 %v202
    %776 = vmatprep.subr.mxu0 0.0
    %777 = vmatpush1.msra.mxu0 %v201
    %778 = vmatprep.subr.mxu0 0.0
    %779 = vmatpush1.msra.mxu0 %v200
    %780 = vmatprep.subr.mxu0 0.0
    %781 = vmatpush1.msra.mxu0 %v199
    %782 = vmatprep.subr.mxu0 0.0
    %783 = vmatpush1.msra.mxu0 %v198
    %784 = vmatprep.subr.mxu0 0.0
    %785 = vmatpush1.msra.mxu0 %v197
    %786 = vmatprep.subr.mxu0 0.0
    %787 = vmatpush1.msra.mxu0 %v196
    %788 = vmatprep.subr.mxu0 0.0
    %789 = vmatpush1.msra.mxu0 %v195
    %790 = vmatprep.subr.mxu0 0.0
    %791 = vmatpush1.msra.mxu0 %v194
    %792 = vmatprep.subr.mxu0 0.0
    %793 = vmatpush1.msra.mxu0 %v193
    %794 = vmatprep.subr.mxu0 0.0
    %795 = vmatpush1.msra.mxu0 %v192
    %796 = vmatprep.subr.mxu0 0.0
    %797 = vmatpush1.msra.mxu0 %v191
    %798 = vmatprep.subr.mxu0 0.0
    %799 = vmatpush1.msra.mxu0 %v190
    %800 = vmatprep.subr.mxu0 0.0
    %801 = vmatpush1.msra.mxu0 %v189
    %802 = vmatprep.subr.mxu0 0.0
    %803 = vmatpush1.msra.mxu0 %v188
    %804 = vmatprep.subr.mxu0 0.0
    %805 = vmatpush2.msra.mxu0 %v219
    %806 = vmatprep.subr.mxu0 0.0
    %807 = vmatpush2.msra.mxu0 %v218
    %808 = vmatprep.subr.mxu0 0.0
    %809 = vmatpush2.msra.mxu0 %v217
    %810 = vmatprep.subr.mxu0 0.0
    %811 = vmatpush2.msra.mxu0 %v216
    %812 = vmatprep.subr.mxu0 0.0
    %813 = vmatpush2.msra.mxu0 %v215
    %814 = vmatprep.subr.mxu0 0.0
    %815 = vmatpush2.msra.mxu0 %v214
    %816 = vmatprep.subr.mxu0 0.0
    %817 = vmatpush2.msra.mxu0 %v213
    %818 = vmatprep.subr.mxu0 0.0
    %819 = vmatpush2.msra.mxu0 %v212
    %820 = vmatprep.subr.mxu0 0.0
    %821 = vmatpush2.msra.mxu0 %v211
    %822 = vmatprep.subr.mxu0 0.0
    %823 = vmatpush2.msra.mxu0 %v210
    %824 = vmatprep.subr.mxu0 0.0
    %825 = vmatpush2.msra.mxu0 %v209
    %826 = vmatprep.subr.mxu0 0.0
    %827 = vmatpush2.msra.mxu0 %v208
    %828 = vmatprep.subr.mxu0 0.0
    %829 = vmatpush2.msra.mxu0 %v207
    %830 = vmatprep.subr.mxu0 0.0
    %831 = vmatpush2.msra.mxu0 %v206
    %832 = vmatprep.subr.mxu0 0.0
    %833 = vmatpush2.msra.mxu0 %v205
    %834 = vmatprep.subr.mxu0 0.0
    %835 = vmatpush2.msra.mxu0 %v204
    %836 = vmatprep.mubr.f32.mxu0 %v378
    %837 = vmatmul.mubr.f32.gmra.mxu0 %v376
    %v838 = vpop.f32.mrf.mxu0
    %v839 = vadd.f32 %v769, %v838
    %v840 = vpop.f32.mrf.mxu0
    %841 = vdwg.mxu0
    %842 = vmatprep.subr.mxu0 0.0
    %843 = vmatpush1.msra.mxu0 %v235
    %844 = vmatprep.subr.mxu0 0.0
    %845 = vmatpush1.msra.mxu0 %v234
    %846 = vmatprep.subr.mxu0 0.0
    %847 = vmatpush1.msra.mxu0 %v233
    %848 = vmatprep.subr.mxu0 0.0
    %849 = vmatpush1.msra.mxu0 %v232
    %850 = vmatprep.subr.mxu0 0.0
    %851 = vmatpush1.msra.mxu0 %v231
    %852 = vmatprep.subr.mxu0 0.0
    %853 = vmatpush1.msra.mxu0 %v230
    %854 = vmatprep.subr.mxu0 0.0
    %855 = vmatpush1.msra.mxu0 %v229
    %856 = vmatprep.subr.mxu0 0.0
    %857 = vmatpush1.msra.mxu0 %v228
    %858 = vmatprep.subr.mxu0 0.0
    %859 = vmatpush1.msra.mxu0 %v227
    %860 = vmatprep.subr.mxu0 0.0
    %861 = vmatpush1.msra.mxu0 %v226
    %862 = vmatprep.subr.mxu0 0.0
    %863 = vmatpush1.msra.mxu0 %v225
    %864 = vmatprep.subr.mxu0 0.0
    %865 = vmatpush1.msra.mxu0 %v224
    %866 = vmatprep.subr.mxu0 0.0
    %867 = vmatpush1.msra.mxu0 %v223
    %868 = vmatprep.subr.mxu0 0.0
    %869 = vmatpush1.msra.mxu0 %v222
    %870 = vmatprep.subr.mxu0 0.0
    %871 = vmatpush1.msra.mxu0 %v221
    %872 = vmatprep.subr.mxu0 0.0
    %873 = vmatpush1.msra.mxu0 %v220
    %874 = vmatprep.subr.mxu0 0.0
    %875 = vmatpush2.msra.mxu0 %v251
    %876 = vmatprep.subr.mxu0 0.0
    %877 = vmatpush2.msra.mxu0 %v250
    %878 = vmatprep.subr.mxu0 0.0
    %879 = vmatpush2.msra.mxu0 %v249
    %880 = vmatprep.subr.mxu0 0.0
    %881 = vmatpush2.msra.mxu0 %v248
    %882 = vmatprep.subr.mxu0 0.0
    %883 = vmatpush2.msra.mxu0 %v247
    %884 = vmatprep.subr.mxu0 0.0
    %885 = vmatpush2.msra.mxu0 %v246
    %886 = vmatprep.subr.mxu0 0.0
    %887 = vmatpush2.msra.mxu0 %v245
    %888 = vmatprep.subr.mxu0 0.0
    %889 = vmatpush2.msra.mxu0 %v244
    %890 = vmatprep.subr.mxu0 0.0
    %891 = vmatpush2.msra.mxu0 %v243
    %892 = vmatprep.subr.mxu0 0.0
    %893 = vmatpush2.msra.mxu0 %v242
    %894 = vmatprep.subr.mxu0 0.0
    %895 = vmatpush2.msra.mxu0 %v241
    %896 = vmatprep.subr.mxu0 0.0
    %897 = vmatpush2.msra.mxu0 %v240
    %898 = vmatprep.subr.mxu0 0.0
    %899 = vmatpush2.msra.mxu0 %v239
    %900 = vmatprep.subr.mxu0 0.0
    %901 = vmatpush2.msra.mxu0 %v238
    %902 = vmatprep.subr.mxu0 0.0
    %903 = vmatpush2.msra.mxu0 %v237
    %904 = vmatprep.subr.mxu0 0.0
    %905 = vmatpush2.msra.mxu0 %v236
    %906 = vmatprep.mubr.f32.mxu0 %v394
    %907 = vmatmul.mubr.f32.gmra.mxu0 %v386
    %v908 = vpop.f32.mrf.mxu0
    %v909 = vadd.f32 %v839, %v908
    %v910 = vpop.f32.mrf.mxu0
    %911 = vdwg.mxu0
    %912 = vmatprep.subr.mxu0 0.0
    %913 = vmatpush1.msra.mxu0 %v267
    %914 = vmatprep.subr.mxu0 0.0
    %915 = vmatpush1.msra.mxu0 %v266
    %916 = vmatprep.subr.mxu0 0.0
    %917 = vmatpush1.msra.mxu0 %v265
    %918 = vmatprep.subr.mxu0 0.0
    %919 = vmatpush1.msra.mxu0 %v264
    %920 = vmatprep.subr.mxu0 0.0
    %921 = vmatpush1.msra.mxu0 %v263
    %922 = vmatprep.subr.mxu0 0.0
    %923 = vmatpush1.msra.mxu0 %v262
    %924 = vmatprep.subr.mxu0 0.0
    %925 = vmatpush1.msra.mxu0 %v261
    %926 = vmatprep.subr.mxu0 0.0
    %927 = vmatpush1.msra.mxu0 %v260
    %928 = vmatprep.subr.mxu0 0.0
    %929 = vmatpush1.msra.mxu0 %v259
    %930 = vmatprep.subr.mxu0 0.0
    %931 = vmatpush1.msra.mxu0 %v258
    %932 = vmatprep.subr.mxu0 0.0
    %933 = vmatpush1.msra.mxu0 %v257
    %934 = vmatprep.subr.mxu0 0.0
    %935 = vmatpush1.msra.mxu0 %v256
    %936 = vmatprep.subr.mxu0 0.0
    %937 = vmatpush1.msra.mxu0 %v255
    %938 = vmatprep.subr.mxu0 0.0
    %939 = vmatpush1.msra.mxu0 %v254
    %940 = vmatprep.subr.mxu0 0.0
    %941 = vmatpush1.msra.mxu0 %v253
    %942 = vmatprep.subr.mxu0 0.0
    %943 = vmatpush1.msra.mxu0 %v252
    %944 = vmatprep.subr.mxu0 0.0
    %945 = vmatpush2.msra.mxu0 %v283
    %946 = vmatprep.subr.mxu0 0.0
    %947 = vmatpush2.msra.mxu0 %v282
    %948 = vmatprep.subr.mxu0 0.0
    %949 = vmatpush2.msra.mxu0 %v281
    %950 = vmatprep.subr.mxu0 0.0
    %951 = vmatpush2.msra.mxu0 %v280
    %952 = vmatprep.subr.mxu0 0.0
    %953 = vmatpush2.msra.mxu0 %v279
    %954 = vmatprep.subr.mxu0 0.0
    %955 = vmatpush2.msra.mxu0 %v278
    %956 = vmatprep.subr.mxu0 0.0
    %957 = vmatpush2.msra.mxu0 %v277
    %958 = vmatprep.subr.mxu0 0.0
    %959 = vmatpush2.msra.mxu0 %v276
    %960 = vmatprep.subr.mxu0 0.0
    %961 = vmatpush2.msra.mxu0 %v275
    %962 = vmatprep.subr.mxu0 0.0
    %963 = vmatpush2.msra.mxu0 %v274
    %964 = vmatprep.subr.mxu0 0.0
    %965 = vmatpush2.msra.mxu0 %v273
    %966 = vmatprep.subr.mxu0 0.0
    %967 = vmatpush2.msra.mxu0 %v272
    %968 = vmatprep.subr.mxu0 0.0
    %969 = vmatpush2.msra.mxu0 %v271
    %970 = vmatprep.subr.mxu0 0.0
    %971 = vmatpush2.msra.mxu0 %v270
    %972 = vmatprep.subr.mxu0 0.0
    %973 = vmatpush2.msra.mxu0 %v269
    %974 = vmatprep.subr.mxu0 0.0
    %975 = vmatpush2.msra.mxu0 %v268
    %976 = vmatprep.mubr.f32.mxu0 %v395
    %977 = vmatmul.mubr.f32.gmra.mxu0 %v393
    %v978 = vpop.f32.mrf.mxu0
    %v979 = vadd.f32 %v909, %v978
    %v980 = vpop.f32.mrf.mxu0
    %981 = vdwg.mxu0
    %982 = vmatprep.subr.mxu0 0.0
    %983 = vmatpush1.msra.mxu0 %v299
    %984 = vmatprep.subr.mxu0 0.0
    %985 = vmatpush1.msra.mxu0 %v298
    %986 = vmatprep.subr.mxu0 0.0
    %987 = vmatpush1.msra.mxu0 %v297
    %988 = vmatprep.subr.mxu0 0.0
    %989 = vmatpush1.msra.mxu0 %v296
    %990 = vmatprep.subr.mxu0 0.0
    %991 = vmatpush1.msra.mxu0 %v295
    %992 = vmatprep.subr.mxu0 0.0
    %993 = vmatpush1.msra.mxu0 %v294
    %994 = vmatprep.subr.mxu0 0.0
    %995 = vmatpush1.msra.mxu0 %v293
    %996 = vmatprep.subr.mxu0 0.0
    %997 = vmatpush1.msra.mxu0 %v292
    %998 = vmatprep.subr.mxu0 0.0
    %999 = vmatpush1.msra.mxu0 %v291
    %1000 = vmatprep.subr.mxu0 0.0
    %1001 = vmatpush1.msra.mxu0 %v290
    %1002 = vmatprep.subr.mxu0 0.0
    %1003 = vmatpush1.msra.mxu0 %v289
    %1004 = vmatprep.subr.mxu0 0.0
    %1005 = vmatpush1.msra.mxu0 %v288
    %1006 = vmatprep.subr.mxu0 0.0
    %1007 = vmatpush1.msra.mxu0 %v287
    %1008 = vmatprep.subr.mxu0 0.0
    %1009 = vmatpush1.msra.mxu0 %v286
    %1010 = vmatprep.subr.mxu0 0.0
    %1011 = vmatpush1.msra.mxu0 %v285
    %1012 = vmatprep.subr.mxu0 0.0
    %1013 = vmatpush1.msra.mxu0 %v284
    %1014 = vmatprep.subr.mxu0 0.0
    %1015 = vmatpush2.msra.mxu0 %v315
    %1016 = vmatprep.subr.mxu0 0.0
    %1017 = vmatpush2.msra.mxu0 %v314
    %1018 = vmatprep.subr.mxu0 0.0
    %1019 = vmatpush2.msra.mxu0 %v313
    %1020 = vmatprep.subr.mxu0 0.0
    %1021 = vmatpush2.msra.mxu0 %v312
    %1022 = vmatprep.subr.mxu0 0.0
    %1023 = vmatpush2.msra.mxu0 %v311
    %1024 = vmatprep.subr.mxu0 0.0
    %1025 = vmatpush2.msra.mxu0 %v310
    %1026 = vmatprep.subr.mxu0 0.0
    %1027 = vmatpush2.msra.mxu0 %v309
    %1028 = vmatprep.subr.mxu0 0.0
    %1029 = vmatpush2.msra.mxu0 %v308
    %1030 = vmatprep.subr.mxu0 0.0
    %1031 = vmatpush2.msra.mxu0 %v307
    %1032 = vmatprep.subr.mxu0 0.0
    %1033 = vmatpush2.msra.mxu0 %v306
    %1034 = vmatprep.subr.mxu0 0.0
    %1035 = vmatpush2.msra.mxu0 %v305
    %1036 = vmatprep.subr.mxu0 0.0
    %1037 = vmatpush2.msra.mxu0 %v304
    %1038 = vmatprep.subr.mxu0 0.0
    %1039 = vmatpush2.msra.mxu0 %v303
    %1040 = vmatprep.subr.mxu0 0.0
    %1041 = vmatpush2.msra.mxu0 %v302
    %1042 = vmatprep.subr.mxu0 0.0
    %1043 = vmatpush2.msra.mxu0 %v301
    %1044 = vmatprep.subr.mxu0 0.0
    %1045 = vmatpush2.msra.mxu0 %v300
    %1046 = vmatprep.mubr.f32.mxu0 %v403
    %1047 = vmatmul.mubr.f32.gmra.mxu0 %v402
    %v1048 = vpop.f32.mrf.mxu0
    %v1049 = vadd.f32 %v979, %v1048
    %v1050 = vpop.f32.mrf.mxu0
    %1051 = vdwg.mxu0
    %v1052 = vmul.f32 %v1049, 0.5
    %v1053 = vtanh.pop %v1052
    %v1054 = vadd.f32 %v1053, 1.0
    %v1055 = vmul.f32 %v1054, 0.5
    %v1056 = vld [vmem:[%s3] sm:$0x1]
    %v1057 = vld [vmem:[#allocation2] sm:$0x1]
    %1059 = vset.pattern.permute.xlu0 0
    %1060 = vperm.xlu0 %1059, %v1057
    %v1061 = vpop.permute.xlu0 %1060
    %v1063 = vlaneseq
    %v1064 = vshrl.u32 %v1063, 7
    %v1065 = vsub.s32 0, %v1064
    %v1066 = vrot.slane %v1061, %v1065
    %vm1067 = vcmask 162816
    %v1069 = vsel %vm1067, %v1056, 0
    %v1072 = vsel %vm1067, %v1055, 0
    %1074 = vmatprep.subr.mxu0 0.0
    %1075 = vmatpush1.xpose.msra.mxu0 0.0
    %1076 = vmatprep.subr.mxu0 0.0
    %1077 = vmatpush1.xpose.msra.mxu0 0.0
    %1078 = vmatprep.subr.mxu0 0.0
    %1079 = vmatpush1.xpose.msra.mxu0 0.0
    %1080 = vmatprep.subr.mxu0 0.0
    %1081 = vmatpush1.xpose.msra.mxu0 0.0
    %1082 = vmatprep.subr.mxu0 0.0
    %1083 = vmatpush1.xpose.msra.mxu0 0.0
    %1084 = vmatprep.subr.mxu0 0.0
    %1085 = vmatpush1.xpose.msra.mxu0 0.0
    %1086 = vmatprep.subr.mxu0 0.0
    %1087 = vmatpush1.xpose.msra.mxu0 0.0
    %1088 = vmatprep.subr.mxu0 0.0
    %1089 = vmatpush1.xpose.msra.mxu0 0.0
    %1090 = vmatprep.subr.mxu0 0.0
    %1091 = vmatpush1.xpose.msra.mxu0 0.0
    %1092 = vmatprep.subr.mxu0 0.0
    %1093 = vmatpush1.xpose.msra.mxu0 0.0
    %1094 = vmatprep.subr.mxu0 0.0
    %1095 = vmatpush1.xpose.msra.mxu0 0.0
    %1096 = vmatprep.subr.mxu0 0.0
    %1097 = vmatpush1.xpose.msra.mxu0 0.0
    %1098 = vmatprep.subr.mxu0 0.0
    %1099 = vmatpush1.xpose.msra.mxu0 0.0
    %1100 = vmatprep.subr.mxu0 0.0
    %1101 = vmatpush1.xpose.msra.mxu0 0.0
    %1102 = vmatprep.subr.mxu0 0.0
    %1103 = vmatpush1.xpose.msra.mxu0 0.0
    %1104 = vmatprep.subr.mxu0 0.0
    %1105 = vmatpush1.xpose.msra.mxu0 %v1072
    %1106 = vmatprep.subr.mxu0 0.0
    %1107 = vmatpush2.xpose.msra.mxu0 0.0
    %1108 = vmatprep.subr.mxu0 0.0
    %1109 = vmatpush2.xpose.msra.mxu0 0.0
    %1110 = vmatprep.subr.mxu0 0.0
    %1111 = vmatpush2.xpose.msra.mxu0 0.0
    %1112 = vmatprep.subr.mxu0 0.0
    %1113 = vmatpush2.xpose.msra.mxu0 0.0
    %1114 = vmatprep.subr.mxu0 0.0
    %1115 = vmatpush2.xpose.msra.mxu0 0.0
    %1116 = vmatprep.subr.mxu0 0.0
    %1117 = vmatpush2.xpose.msra.mxu0 0.0
    %1118 = vmatprep.subr.mxu0 0.0
    %1119 = vmatpush2.xpose.msra.mxu0 0.0
    %1120 = vmatprep.subr.mxu0 0.0
    %1121 = vmatpush2.xpose.msra.mxu0 0.0
    %1122 = vmatprep.subr.mxu0 0.0
    %1123 = vmatpush2.xpose.msra.mxu0 0.0
    %1124 = vmatprep.subr.mxu0 0.0
    %1125 = vmatpush2.xpose.msra.mxu0 0.0
    %1126 = vmatprep.subr.mxu0 0.0
    %1127 = vmatpush2.xpose.msra.mxu0 0.0
    %1128 = vmatprep.subr.mxu0 0.0
    %1129 = vmatpush2.xpose.msra.mxu0 0.0
    %1130 = vmatprep.subr.mxu0 0.0
    %1131 = vmatpush2.xpose.msra.mxu0 0.0
    %1132 = vmatprep.subr.mxu0 0.0
    %1133 = vmatpush2.xpose.msra.mxu0 0.0
    %1134 = vmatprep.subr.mxu0 0.0
    %1135 = vmatpush2.xpose.msra.mxu0 0.0
    %1136 = vmatprep.subr.mxu0 0.0
    %1137 = vmatpush2.xpose.msra.mxu0 0.0
    %1138 = vmatprep.mubr.f32.mxu0 0.0
    %1139 = vmatmul.mubr.f32.gmra.mxu0 %v1069
    %v1140 = vpop.f32.mrf.mxu0
    %v1141 = vadd.f32 %v1066, %v1140
    %v1142 = vpop.f32.mrf.mxu0
    %1143 = vdwg.mxu0
    %v1144 = vmul.f32 %v1141, 0.5
    %v1145 = vtanh.pop %v1144
    %v1146 = vadd.f32 %v1145, 1.0
    %v1147 = vmul.f32 %v1146, 0.5
    %vm1148 = vcmask 8192
    %1149 = vst.msk [vmem:[#allocation3] sm:$0x1] %vm1148, %v1147
    // Predicated region
    $region22: #{blink_forward_fused.1} parent=1 // pred_check
      _
    $region23: #{blink_forward_fused.1} parent=1 // pred_check_branch
      %1151 = sbr.rel (0) target = $region25
    $region24: #{blink_forward_fused.1} parent=1 // pred_region
      %s1153 = ssub.s32 16, 16
      %1154 = vsyncadd [#allocation4], %s1153
      %s1156 = sshll.u32 [#allocation3], 4
      %s1157 = int_to_ptr.vmem [resolvable:$true] %s1156
      %1159 = dma.vmem_to_hbm [thread:$0]  %s1157, 16, %s5, [#allocation4]
    $region25: #{blink_forward_fused.1} parent=1 // pred_fallthru
      _
    // Predicated region
    $region26: #{blink_forward_fused.1} parent=1 // pred_check
      _
    $region27: #{blink_forward_fused.1} parent=1 // pred_check_branch
      %1161 = sbr.rel (0) target = $region29
    $region28: #{blink_forward_fused.1} parent=1 // pred_region
      %1162 = dma.done [#allocation4], 16
    $region29: #{blink_forward_fused.1} parent=1 // pred_fallthru
      _
    %1163 = vsyncpa [#allocation4], 1

</llo_original>
